<compile_context>
chip_gen: v5e
topology: v5e:2x2
jax: 0.10.0
libtpu: 0.0.40
codegen_flags: <defaults>
</compile_context>

<pallas_src>
import numpy as np

import jax
import jax.numpy as jnp
from jax import lax
from jax.experimental import pallas as pl
from jax.experimental.pallas import tpu as pltpu

# ----------------------- model config (small, synthetic) --------------------
CAT_FEATURES = (10, 20, 15, 8)        # num categories per categorical feature
EMBEDDING_DIMS = (8, 8, 8, 8)         # per-feature embedding dims
HIDDEN_DIMS = (32, 32)                # MLP hidden layer sizes
OUTPUT_DIM = 16

NUM_FEATURES = len(CAT_FEATURES)
TOTAL_EMB_DIM = sum(EMBEDDING_DIMS)
C_TOTAL = sum(CAT_FEATURES)                        # 53 combined categories
C_PAD = -(-C_TOTAL // 8) * 8                       # sublane-aligned (56)
CAT_OFFSETS = tuple(int(v) for v in np.cumsum((0,) + CAT_FEATURES)[:-1])
HIDDEN_BIAS_OFFSETS = tuple(int(v) for v in np.cumsum((0,) + HIDDEN_DIMS)[:-1])


# ------------------------------- kernel -------------------------------------
def categorical_mlp_kernel(xT_ref, *refs):
    """Fused multi-hot embedding + MLP forward.

    VMEM refs:
      xT_ref            (F, T) int32   offset-shifted indices, rows on lanes.
      refs[0:n_hidden]  per hidden layer, transposed weight (H_i, in_i) f32;
                        layer 0 is the embedding-fused (H1, C_PAD) matrix.
      refs[n_hidden]    (sum H_i, 1) f32   consolidated hidden biases (columns).
      refs[n_hidden+1]  (H_last, OUT) f32  output weight (as stored, (in, out)).
      refs[n_hidden+2]  (1, OUT) f32       output bias (row).
      refs[-1]          (T, OUT) f32       output block.
    """
    n_hidden = len(HIDDEN_DIMS)
    w_hidden_refs = refs[:n_hidden]
    b_hidden_ref = refs[n_hidden]
    w_out_ref = refs[n_hidden + 1]
    b_out_ref = refs[n_hidden + 2]
    o_ref = refs[-1]

    xT = xT_ref[...]                                   # (F, T) int32
    t = xT.shape[1]

    # Combined multi-hot selector, (C_PAD, T): category id on sublanes, rows on
    # lanes. Features occupy DISJOINT category ranges, so OR of the per-feature
    # one-hots equals their sum; single cast to f32 at the end.
    # NOTE: out-of-range indices silently select nothing (torch.nn.Embedding
    # would raise); inputs are generated in-range here.
    iota_c = lax.broadcasted_iota(jnp.int32, (C_PAD, t), 0)
    hot = xT[0:1, :] == iota_c
    for f in range(1, NUM_FEATURES):
        hot = jnp.logical_or(hot, xT[f:f + 1, :] == iota_c)
    h = hot.astype(jnp.float32)                        # (C_PAD, T)

    # Hidden layers. Layer 0's weight already contains the embedding tables,
    # so one MXU matmul replaces lookup + concat + Linear. f32 dots keep exact
    # parity with the f32 reference (MXU is nowhere near saturated here).
    b_hidden = b_hidden_ref[...]                       # (sum H_i, 1)
    for li, hd in enumerate(HIDDEN_DIMS):
        off = HIDDEN_BIAS_OFFSETS[li]
        h = jnp.dot(w_hidden_refs[li][...], h,
                    preferred_element_type=jnp.float32)
        h = jnp.maximum(h + b_hidden[off:off + hd, :], 0.0)   # (H_i, T)

    # Final Linear straight into (T, OUT): contract h's sublane (hidden) dim
    # against w_out's leading dim (transposed-LHS matmul on the MXU). No XLU
    # transpose and no wrapper-side HBM transpose pass.
    out = lax.dot_general(h, w_out_ref[...],
                          dimension_numbers=(((0,), (0,)), ((), ())),
                          preferred_element_type=jnp.float32)  # (T, OUT)
    o_ref[...] = out + b_out_ref[...]


# ------------------------------- wrapper -------------------------------------
def _choose_row_tile(n_rows: int) -> int:
    """Row tile: multiple of 256 (MXU N on v6e/v7x), up to 1024 to amortize the
    per-grid-step overhead, but small enough that the parallel row axis has
    >= 2 grid steps whenever the batch allows (v7x: 2 TensorCores)."""
    for tile in (1024, 512, 256):
        if n_rows >= 2 * tile:
            return tile
    return 256


@jax.jit
def categorical_mlp_forward(x, emb_tables, linear_params):
    """x: (..., NUM_FEATURES) int  ->  (..., OUTPUT_DIM) float32."""
    original_shape = x.shape
    x_flat = x.reshape(-1, NUM_FEATURES).astype(jnp.int32)
    n_rows = x_flat.shape[0]

    row_tile = _choose_row_tile(n_rows)
    padded_rows = -(-n_rows // row_tile) * row_tile

    # Offset-shift indices into the combined category space and transpose so
    # each feature's indices form a contiguous lane row inside the kernel.
    offsets = jnp.asarray(CAT_OFFSETS, jnp.int32)
    x_off = x_flat + offsets[None, :]                           # (N, F)
    x_off = jnp.pad(x_off, ((0, padded_rows - n_rows), (0, 0)))  # pad rows (0: harmless, sliced off)
    x_t = x_off.T                                               # (F, padded_rows)

    # Fold embedding tables into the first Linear layer:
    #   concat_i(onehot_i @ table_i) @ W1 == multi_hot @ vstack_i(table_i @ W1_i)
    w1, b1 = linear_params[0]
    parts, off = [], 0
    for tbl, d in zip(emb_tables, EMBEDDING_DIMS):
        parts.append(jnp.dot(tbl, w1[off:off + d, :],
                             precision=lax.Precision.HIGHEST))
        off += d
    fused = jnp.concatenate(parts, axis=0)                      # (C_TOTAL, H1)
    fused = jnp.pad(fused, ((0, C_PAD - C_TOTAL), (0, 0)))      # (C_PAD, H1)

    # Parameter arrays: hidden weights (transposed, layer 0 fused), one
    # consolidated hidden-bias column, output weight (as stored), output-bias row.
    hidden_weights = [fused.T]                                  # (H1, C_PAD)
    hidden_biases = [b1]
    for (w, b) in linear_params[1:-1]:
        hidden_weights.append(w.T)
        hidden_biases.append(b)
    w_out, b_out = linear_params[-1]
    param_arrays = (hidden_weights
                    + [jnp.concatenate(hidden_biases).reshape(-1, 1)]
                    + [w_out, b_out.reshape(1, -1)])

    grid = (padded_rows // row_tile,)
    in_specs = [pl.BlockSpec((NUM_FEATURES, row_tile), lambda i: (0, i))]
    for a in param_arrays:
        # Constant index map -> DMA'd once, VMEM-resident across the grid.
        in_specs.append(pl.BlockSpec(a.shape, lambda i: (0, 0)))
    out_spec = pl.BlockSpec((row_tile, OUTPUT_DIM), lambda i: (i, 0))

    out = pl.pallas_call(
        categorical_mlp_kernel,
        out_shape=jax.ShapeDtypeStruct((padded_rows, OUTPUT_DIM), jnp.float32),
        grid=grid,
        in_specs=in_specs,
        out_specs=out_spec,
        compiler_params=pltpu.CompilerParams(
            dimension_semantics=("parallel",),     # shard rows over v7x's 2 TCs
            vmem_limit_bytes=32 * 1024 * 1024,     # safe under v7x's 64 MiB
        ),
    )(x_t, *param_arrays)

    out = out[:n_rows]                                          # drop row padding
    return out.reshape(*original_shape[:-1], OUTPUT_DIM)


# ------------------------------- params / reference --------------------------
def init_params(key):
    """Deterministic parameter init (shapes match the PyTorch module)."""
    keys = jax.random.split(key, NUM_FEATURES + 2 * (len(HIDDEN_DIMS) + 1))
    k = iter(keys)

    emb_tables = []
    for n_cat, d in zip(CAT_FEATURES, EMBEDDING_DIMS):
        emb_tables.append(
            jax.random.normal(next(k), (n_cat, d), jnp.float32) * 0.1)

    linear_params = []
    in_dim = TOTAL_EMB_DIM
    for h in list(HIDDEN_DIMS) + [OUTPUT_DIM]:
        # stored as (in, out) == transpose of torch's nn.Linear.weight
        w = jax.random.normal(next(k), (in_dim, h), jnp.float32) * 0.1
        b = jax.random.normal(next(k), (h,), jnp.float32) * 0.01
        linear_params.append((w, b))
        in_dim = h
    return emb_tables, linear_params


def reference_forward(x, emb_tables, linear_params):
    """Pure-JAX reference mirroring the PyTorch forward."""
    original_shape = x.shape
    x_flat = x.reshape(-1, original_shape[-1])
    embs = [emb_tables[i][x_flat[:, i]] for i in range(NUM_FEATURES)]
    h = jnp.concatenate(embs, axis=1)
    for li, (w, b) in enumerate(linear_params):
        h = h @ w + b
        if li < len(linear_params) - 1:
            h = jnp.maximum(h, 0.0)
    return h.reshape(*original_shape[:-1], OUTPUT_DIM)


if __name__ == "__main__":
    key = jax.random.PRNGKey(0)
    pkey, xkey = jax.random.split(key)

    emb_tables, linear_params = init_params(pkey)

    batch, seq = 2, 8
    # categorical indices, each column bounded by its feature's cardinality
    cols = []
    xkeys = jax.random.split(xkey, NUM_FEATURES)
    for i, n_cat in enumerate(CAT_FEATURES):
        cols.append(jax.random.randint(xkeys[i], (batch, seq, 1), 0, n_cat,
                                       dtype=jnp.int32))
    x = jnp.concatenate(cols, axis=-1)          # (2, 8, 4) int32

    out = categorical_mlp_forward(x, emb_tables, linear_params)
    out = jax.block_until_ready(out)

    ref = reference_forward(x, emb_tables, linear_params)
    assert out.shape == (batch, seq, OUTPUT_DIM), out.shape
    assert jnp.allclose(out, ref, atol=1e-4, rtol=1e-4), "mismatch vs reference"

    print("KERNEL_OK")
</pallas_src>

<mosaic_0001>
module attributes {stable_mosaic.version = 11 : i64} {
  func.func @categorical_mlp_kernel(%arg0: i32, %arg1: memref<4x256xi32, #tpu.memory_space<vmem>>, %arg2: memref<32x56xf32, #tpu.memory_space<vmem>>, %arg3: memref<32x32xf32, #tpu.memory_space<vmem>>, %arg4: memref<64x1xf32, #tpu.memory_space<vmem>>, %arg5: memref<32x16xf32, #tpu.memory_space<vmem>>, %arg6: memref<1x16xf32, #tpu.memory_space<vmem>>, %arg7: memref<256x16xf32, #tpu.memory_space<vmem>>) attributes {dimension_semantics = [#tpu.dimension_semantics<parallel>], iteration_bounds = array<i64: 1>, scalar_prefetch = 0 : i64, scratch_operands = 0 : i64, tpu.core_type = #tpu.core_type<tc>, window_params = [{transform_indices = @transform_0, window_bounds = array<i64: 4, 256>}, {pipeline_mode = #tpu.pipeline_mode<synchronous>, transform_indices = @transform_1, window_bounds = array<i64: 32, 56>}, {pipeline_mode = #tpu.pipeline_mode<synchronous>, transform_indices = @transform_2, window_bounds = array<i64: 32, 32>}, {pipeline_mode = #tpu.pipeline_mode<synchronous>, transform_indices = @transform_3, window_bounds = array<i64: 64, 1>}, {pipeline_mode = #tpu.pipeline_mode<synchronous>, transform_indices = @transform_4, window_bounds = array<i64: 32, 16>}, {pipeline_mode = #tpu.pipeline_mode<synchronous>, transform_indices = @transform_5, window_bounds = array<i64: 1, 16>}, {transform_indices = @transform_6, window_bounds = array<i64: 256, 16>}]} {
    %c0 = arith.constant 0 : index
    %c0_0 = arith.constant 0 : index
    %0 = vector.load %arg1[%c0, %c0_0] : memref<4x256xi32, #tpu.memory_space<vmem>>, vector<4x256xi32>
    %1 = tpu.iota {dimensions = array<i32: 0>} : vector<56x256xi32>
    %2 = vector.extract_strided_slice %0 {offsets = [0, 0], sizes = [1, 256], strides = [1, 1]} : vector<4x256xi32> to vector<1x256xi32>
    %3 = vector.broadcast %2 : vector<1x256xi32> to vector<56x256xi32>
    %4 = arith.cmpi eq, %3, %1 : vector<56x256xi32>
    %5 = vector.extract_strided_slice %0 {offsets = [1, 0], sizes = [1, 256], strides = [1, 1]} : vector<4x256xi32> to vector<1x256xi32>
    %6 = vector.broadcast %5 : vector<1x256xi32> to vector<56x256xi32>
    %7 = arith.cmpi eq, %6, %1 : vector<56x256xi32>
    %8 = arith.ori %4, %7 : vector<56x256xi1>
    %9 = vector.extract_strided_slice %0 {offsets = [2, 0], sizes = [1, 256], strides = [1, 1]} : vector<4x256xi32> to vector<1x256xi32>
    %10 = vector.broadcast %9 : vector<1x256xi32> to vector<56x256xi32>
    %11 = arith.cmpi eq, %10, %1 : vector<56x256xi32>
    %12 = arith.ori %8, %11 : vector<56x256xi1>
    %13 = vector.extract_strided_slice %0 {offsets = [3, 0], sizes = [1, 256], strides = [1, 1]} : vector<4x256xi32> to vector<1x256xi32>
    %14 = vector.broadcast %13 : vector<1x256xi32> to vector<56x256xi32>
    %15 = arith.cmpi eq, %14, %1 : vector<56x256xi32>
    %16 = arith.ori %12, %15 : vector<56x256xi1>
    %17 = arith.extui %16 : vector<56x256xi1> to vector<56x256xi32>
    %18 = arith.sitofp %17 : vector<56x256xi32> to vector<56x256xf32>
    %c0_1 = arith.constant 0 : index
    %c0_2 = arith.constant 0 : index
    %19 = vector.load %arg4[%c0_1, %c0_2] : memref<64x1xf32, #tpu.memory_space<vmem>>, vector<64x1xf32>
    %c0_3 = arith.constant 0 : index
    %c0_4 = arith.constant 0 : index
    %20 = vector.load %arg2[%c0_3, %c0_4] : memref<32x56xf32, #tpu.memory_space<vmem>>, vector<32x56xf32>
    %cst = arith.constant dense<0.000000e+00> : vector<32x256xf32>
    %21 = tpu.matmul %20, %18, %cst {dimension_numbers = #tpu.dot_dimension_numbers<[1], [0], [0], [1], [0, 0, 1, 1], [], []>} : vector<32x56xf32>, vector<56x256xf32>, vector<32x256xf32> -> vector<32x256xf32>
    %22 = vector.extract_strided_slice %19 {offsets = [0, 0], sizes = [32, 1], strides = [1, 1]} : vector<64x1xf32> to vector<32x1xf32>
    %23 = vector.broadcast %22 : vector<32x1xf32> to vector<32x256xf32>
    %24 = arith.addf %21, %23 : vector<32x256xf32>
    %cst_5 = arith.constant 0.000000e+00 : f32
    %25 = vector.broadcast %cst_5 : f32 to vector<32x256xf32>
    %26 = arith.maximumf %24, %25 : vector<32x256xf32>
    %c0_6 = arith.constant 0 : index
    %c0_7 = arith.constant 0 : index
    %27 = vector.load %arg3[%c0_6, %c0_7] : memref<32x32xf32, #tpu.memory_space<vmem>>, vector<32x32xf32>
    %cst_8 = arith.constant dense<0.000000e+00> : vector<32x256xf32>
    %28 = tpu.matmul %27, %26, %cst_8 {dimension_numbers = #tpu.dot_dimension_numbers<[1], [0], [0], [1], [0, 0, 1, 1], [], []>} : vector<32x32xf32>, vector<32x256xf32>, vector<32x256xf32> -> vector<32x256xf32>
    %29 = vector.extract_strided_slice %19 {offsets = [32, 0], sizes = [32, 1], strides = [1, 1]} : vector<64x1xf32> to vector<32x1xf32>
    %30 = vector.broadcast %29 : vector<32x1xf32> to vector<32x256xf32>
    %31 = arith.addf %28, %30 : vector<32x256xf32>
    %cst_9 = arith.constant 0.000000e+00 : f32
    %32 = vector.broadcast %cst_9 : f32 to vector<32x256xf32>
    %33 = arith.maximumf %31, %32 : vector<32x256xf32>
    %c0_10 = arith.constant 0 : index
    %c0_11 = arith.constant 0 : index
    %34 = vector.load %arg5[%c0_10, %c0_11] : memref<32x16xf32, #tpu.memory_space<vmem>>, vector<32x16xf32>
    %cst_12 = arith.constant dense<0.000000e+00> : vector<256x16xf32>
    %35 = tpu.matmul %33, %34, %cst_12 {dimension_numbers = #tpu.dot_dimension_numbers<[0], [0], [1], [1], [0, 1, 1, 1], [], []>} : vector<32x256xf32>, vector<32x16xf32>, vector<256x16xf32> -> vector<256x16xf32>
    %c0_13 = arith.constant 0 : index
    %c0_14 = arith.constant 0 : index
    %36 = vector.load %arg6[%c0_13, %c0_14] : memref<1x16xf32, #tpu.memory_space<vmem>>, vector<1x16xf32>
    %37 = vector.broadcast %36 : vector<1x16xf32> to vector<256x16xf32>
    %38 = arith.addf %35, %37 : vector<256x16xf32>
    %c0_15 = arith.constant 0 : index
    %c0_16 = arith.constant 0 : index
    %39 = vector.load %arg7[%c0_15, %c0_16] : memref<256x16xf32, #tpu.memory_space<vmem>>, vector<256x16xf32>
    tpu.vector_store %arg7[%c0_15, %c0_16], %38 {strides = array<i32>} : memref<256x16xf32, #tpu.memory_space<vmem>>, vector<256x16xf32>,
    return
  }
  func.func @transform_0(%arg0: i32) -> (i32, i32) {
    %c0_i32 = arith.constant 0 : i32
    %c0_i32_0 = arith.constant 0 : i32
    return %c0_i32, %arg0 : i32, i32
  }
  func.func @transform_1(%arg0: i32) -> (i32, i32) {
    %c0_i32 = arith.constant 0 : i32
    %c0_i32_0 = arith.constant 0 : i32
    %c0_i32_1 = arith.constant 0 : i32
    return %c0_i32, %c0_i32_0 : i32, i32
  }
  func.func @transform_2(%arg0: i32) -> (i32, i32) {
    %c0_i32 = arith.constant 0 : i32
    %c0_i32_0 = arith.constant 0 : i32
    %c0_i32_1 = arith.constant 0 : i32
    return %c0_i32, %c0_i32_0 : i32, i32
  }
  func.func @transform_3(%arg0: i32) -> (i32, i32) {
    %c0_i32 = arith.constant 0 : i32
    %c0_i32_0 = arith.constant 0 : i32
    %c0_i32_1 = arith.constant 0 : i32
    return %c0_i32, %c0_i32_0 : i32, i32
  }
  func.func @transform_4(%arg0: i32) -> (i32, i32) {
    %c0_i32 = arith.constant 0 : i32
    %c0_i32_0 = arith.constant 0 : i32
    %c0_i32_1 = arith.constant 0 : i32
    return %c0_i32, %c0_i32_0 : i32, i32
  }
  func.func @transform_5(%arg0: i32) -> (i32, i32) {
    %c0_i32 = arith.constant 0 : i32
    %c0_i32_0 = arith.constant 0 : i32
    %c0_i32_1 = arith.constant 0 : i32
    return %c0_i32, %c0_i32_0 : i32, i32
  }
  func.func @transform_6(%arg0: i32) -> (i32, i32) {
    %c0_i32 = arith.constant 0 : i32
    %c0_i32_0 = arith.constant 0 : i32
    return %arg0, %c0_i32 : i32, i32
  }
}

</mosaic_0001>

<llo_original>
// kernel: categorical_mlp_forward.1
$region0: #{categorical_mlp_forward.1}
  #allocation0 [shape = 'u32[]', space=smem, size = 0x4, offset = 0x4, fixed_abs, tag = 'smem constant byte address 0x4 - core index']
  #allocation1 [shape = 'u32[72,128]{1,0:T(1,128)}', space=vmem, size = 0x9000, scoped, tag = 'internal scratch']
  %s0 = inlined_call_operand.vmem [shape: s32[4,256], index: 0, kind: input, shape index: {}]
  %s1 = inlined_call_operand.vmem [shape: f32[32,56], index: 1, kind: input, shape index: {}]
  %s2 = inlined_call_operand.vmem [shape: f32[32,32], index: 2, kind: input, shape index: {}]
  %s3 = inlined_call_operand.vmem [shape: f32[64,1], index: 3, kind: input, shape index: {}]
  %s4 = inlined_call_operand.vmem [shape: f32[32,16], index: 4, kind: input, shape index: {}]
  %s5 = inlined_call_operand.vmem [shape: f32[1,16], index: 5, kind: input, shape index: {}]
  %s6 = inlined_call_operand.vmem [shape: f32[256,16], index: 6, kind: output, shape index: {}]
  %s7 = sld [smem:[#allocation0]]
  $region34: #{categorical_mlp_forward.1} parent=0
    _
  %s9 = ssub.s32 1, %s7
  %s10 = scalar_select 0, %s9, %s7
  // Predicated region
  $region2: #{categorical_mlp_forward.1} parent=0 // pred_check
    _
  $region3: #{categorical_mlp_forward.1} parent=0 // pred_check_branch
    %12 = sbr.rel (0) target = $region5
  $region4: #{categorical_mlp_forward.1} parent=0 // pred_region
    _
  $region5: #{categorical_mlp_forward.1} parent=0 // pred_fallthru
    _
  // Predicated region
  $region6: #{categorical_mlp_forward.1} parent=0 // pred_check
    _
  $region7: #{categorical_mlp_forward.1} parent=0 // pred_check_branch
    %14 = sbr.rel (0) target = $region9
  $region8: #{categorical_mlp_forward.1} parent=0 // pred_region
    _
  $region9: #{categorical_mlp_forward.1} parent=0 // pred_fallthru
    _
  // Predicated region
  $region10: #{categorical_mlp_forward.1} parent=0 // pred_check
    _
  $region11: #{categorical_mlp_forward.1} parent=0 // pred_check_branch
    %16 = sbr.rel (0) target = $region13
  $region12: #{categorical_mlp_forward.1} parent=0 // pred_region
    _
  $region13: #{categorical_mlp_forward.1} parent=0 // pred_fallthru
    _
  // Predicated region
  $region14: #{categorical_mlp_forward.1} parent=0 // pred_check
    _
  $region15: #{categorical_mlp_forward.1} parent=0 // pred_check_branch
    %18 = sbr.rel (0) target = $region17
  $region16: #{categorical_mlp_forward.1} parent=0 // pred_region
    _
  $region17: #{categorical_mlp_forward.1} parent=0 // pred_fallthru
    _
  // Predicated region
  $region18: #{categorical_mlp_forward.1} parent=0 // pred_check
    _
  $region19: #{categorical_mlp_forward.1} parent=0 // pred_check_branch
    %20 = sbr.rel (0) target = $region21
  $region20: #{categorical_mlp_forward.1} parent=0 // pred_region
    _
  $region21: #{categorical_mlp_forward.1} parent=0 // pred_fallthru
    _
  // Predicated region
  $region22: #{categorical_mlp_forward.1} parent=0 // pred_check
    _
  $region23: #{categorical_mlp_forward.1} parent=0 // pred_check_branch
    %22 = sbr.rel (0) target = $region25
  $region24: #{categorical_mlp_forward.1} parent=0 // pred_region
    _
  $region25: #{categorical_mlp_forward.1} parent=0 // pred_fallthru
    _
  %v23 = vld [vmem:[%s0] sm:$0xff]
  %v24 = vlaneseq
  %v25 = vshrl.u32 %v24, 7
  %v26 = vadd.s32 %v25, 8
  %v27 = vadd.s32 %v25, 16
  %v28 = vadd.s32 %v25, 24
  %v29 = vadd.s32 %v25, 32
  %v30 = vadd.s32 %v25, 40
  %v31 = vadd.s32 %v25, 48
  %v32 = vperm.slane %v23, 0
  %v33 = vperm.slane %v23, 4
  %v34 = vperm.slane %v32, 0
  %v35 = vperm.slane %v33, 0
  %vm36 = vcmp.eq.s32.totalorder %v34, %v25
  %vm37 = vcmp.eq.s32.totalorder %v35, %v25
  %vm38 = vcmp.eq.s32.totalorder %v34, %v26
  %vm39 = vcmp.eq.s32.totalorder %v35, %v26
  %vm40 = vcmp.eq.s32.totalorder %v34, %v27
  %vm41 = vcmp.eq.s32.totalorder %v35, %v27
  %vm42 = vcmp.eq.s32.totalorder %v34, %v28
  %vm43 = vcmp.eq.s32.totalorder %v35, %v28
  %vm44 = vcmp.eq.s32.totalorder %v34, %v29
  %vm45 = vcmp.eq.s32.totalorder %v35, %v29
  %vm46 = vcmp.eq.s32.totalorder %v34, %v30
  %vm47 = vcmp.eq.s32.totalorder %v35, %v30
  %vm48 = vcmp.eq.s32.totalorder %v34, %v31
  %vm49 = vcmp.eq.s32.totalorder %v35, %v31
  %v50 = vperm.slane %v23, 1
  %v51 = vperm.slane %v23, 5
  %v52 = vperm.slane %v50, 1
  %v53 = vperm.slane %v51, 1
  %vm54 = vcmp.eq.s32.totalorder %v52, %v25
  %vm55 = vcmp.eq.s32.totalorder %v53, %v25
  %vm56 = vcmp.eq.s32.totalorder %v52, %v26
  %vm57 = vcmp.eq.s32.totalorder %v53, %v26
  %vm58 = vcmp.eq.s32.totalorder %v52, %v27
  %vm59 = vcmp.eq.s32.totalorder %v53, %v27
  %vm60 = vcmp.eq.s32.totalorder %v52, %v28
  %vm61 = vcmp.eq.s32.totalorder %v53, %v28
  %vm62 = vcmp.eq.s32.totalorder %v52, %v29
  %vm63 = vcmp.eq.s32.totalorder %v53, %v29
  %vm64 = vcmp.eq.s32.totalorder %v52, %v30
  %vm65 = vcmp.eq.s32.totalorder %v53, %v30
  %vm66 = vcmp.eq.s32.totalorder %v52, %v31
  %vm67 = vcmp.eq.s32.totalorder %v53, %v31
  %vm68 = vmor %vm36, %vm54
  %vm69 = vmor %vm37, %vm55
  %vm70 = vmor %vm38, %vm56
  %vm71 = vmor %vm39, %vm57
  %vm72 = vmor %vm40, %vm58
  %vm73 = vmor %vm41, %vm59
  %vm74 = vmor %vm42, %vm60
  %vm75 = vmor %vm43, %vm61
  %vm76 = vmor %vm44, %vm62
  %vm77 = vmor %vm45, %vm63
  %vm78 = vmor %vm46, %vm64
  %vm79 = vmor %vm47, %vm65
  %vm80 = vmor %vm48, %vm66
  %vm81 = vmor %vm49, %vm67
  %v82 = vperm.slane %v23, 2
  %v83 = vperm.slane %v23, 6
  %v84 = vperm.slane %v82, 2
  %v85 = vperm.slane %v83, 2
  %vm86 = vcmp.eq.s32.totalorder %v84, %v25
  %vm87 = vcmp.eq.s32.totalorder %v85, %v25
  %vm88 = vcmp.eq.s32.totalorder %v84, %v26
  %vm89 = vcmp.eq.s32.totalorder %v85, %v26
  %vm90 = vcmp.eq.s32.totalorder %v84, %v27
  %vm91 = vcmp.eq.s32.totalorder %v85, %v27
  %vm92 = vcmp.eq.s32.totalorder %v84, %v28
  %vm93 = vcmp.eq.s32.totalorder %v85, %v28
  %vm94 = vcmp.eq.s32.totalorder %v84, %v29
  %vm95 = vcmp.eq.s32.totalorder %v85, %v29
  %vm96 = vcmp.eq.s32.totalorder %v84, %v30
  %vm97 = vcmp.eq.s32.totalorder %v85, %v30
  %vm98 = vcmp.eq.s32.totalorder %v84, %v31
  %vm99 = vcmp.eq.s32.totalorder %v85, %v31
  %vm100 = vmor %vm68, %vm86
  %vm101 = vmor %vm69, %vm87
  %vm102 = vmor %vm70, %vm88
  %vm103 = vmor %vm71, %vm89
  %vm104 = vmor %vm72, %vm90
  %vm105 = vmor %vm73, %vm91
  %vm106 = vmor %vm74, %vm92
  %vm107 = vmor %vm75, %vm93
  %vm108 = vmor %vm76, %vm94
  %vm109 = vmor %vm77, %vm95
  %vm110 = vmor %vm78, %vm96
  %vm111 = vmor %vm79, %vm97
  %vm112 = vmor %vm80, %vm98
  %vm113 = vmor %vm81, %vm99
  %v114 = vperm.slane %v23, 3
  %v115 = vperm.slane %v23, 7
  %v116 = vperm.slane %v114, 3
  %v117 = vperm.slane %v115, 3
  %vm118 = vcmp.eq.s32.totalorder %v116, %v25
  %vm119 = vcmp.eq.s32.totalorder %v117, %v25
  %vm120 = vcmp.eq.s32.totalorder %v116, %v26
  %vm121 = vcmp.eq.s32.totalorder %v117, %v26
  %vm122 = vcmp.eq.s32.totalorder %v116, %v27
  %vm123 = vcmp.eq.s32.totalorder %v117, %v27
  %vm124 = vcmp.eq.s32.totalorder %v116, %v28
  %vm125 = vcmp.eq.s32.totalorder %v117, %v28
  %vm126 = vcmp.eq.s32.totalorder %v116, %v29
  %vm127 = vcmp.eq.s32.totalorder %v117, %v29
  %vm128 = vcmp.eq.s32.totalorder %v116, %v30
  %vm129 = vcmp.eq.s32.totalorder %v117, %v30
  %vm130 = vcmp.eq.s32.totalorder %v116, %v31
  %vm131 = vcmp.eq.s32.totalorder %v117, %v31
  %vm132 = vmor %vm100, %vm118
  %vm133 = vmor %vm101, %vm119
  %vm134 = vmor %vm102, %vm120
  %vm135 = vmor %vm103, %vm121
  %vm136 = vmor %vm104, %vm122
  %vm137 = vmor %vm105, %vm123
  %vm138 = vmor %vm106, %vm124
  %vm139 = vmor %vm107, %vm125
  %vm140 = vmor %vm108, %vm126
  %vm141 = vmor %vm109, %vm127
  %vm142 = vmor %vm110, %vm128
  %vm143 = vmor %vm111, %vm129
  %vm144 = vmor %vm112, %vm130
  %vm145 = vmor %vm113, %vm131
  %v146 = vsel %vm132, 1, 0
  %v147 = vsel %vm133, 1, 0
  %v148 = vsel %vm134, 1, 0
  %v149 = vsel %vm135, 1, 0
  %v150 = vsel %vm136, 1, 0
  %v151 = vsel %vm137, 1, 0
  %v152 = vsel %vm138, 1, 0
  %v153 = vsel %vm139, 1, 0
  %v154 = vsel %vm140, 1, 0
  %v155 = vsel %vm141, 1, 0
  %v156 = vsel %vm142, 1, 0
  %v157 = vsel %vm143, 1, 0
  %v158 = vsel %vm144, 1, 0
  %v159 = vsel %vm145, 1, 0
  %v160 = vcvt.s32.f32 %v146
  %v161 = vcvt.s32.f32 %v147
  %v162 = vcvt.s32.f32 %v148
  %v163 = vcvt.s32.f32 %v149
  %v164 = vcvt.s32.f32 %v150
  %v165 = vcvt.s32.f32 %v151
  %v166 = vcvt.s32.f32 %v152
  %v167 = vcvt.s32.f32 %v153
  %v168 = vcvt.s32.f32 %v154
  %v169 = vcvt.s32.f32 %v155
  %v170 = vcvt.s32.f32 %v156
  %v171 = vcvt.s32.f32 %v157
  %v172 = vcvt.s32.f32 %v158
  %v173 = vcvt.s32.f32 %v159
  %v174 = vld [vmem:[%s3] sm:$0xff]
  %v175 = vld [vmem:[%s3 + $0x8] sm:$0xff]
  %v176 = vld [vmem:[%s3 + $0x10] sm:$0xff]
  %v177 = vld [vmem:[%s3 + $0x18] sm:$0xff]
  %v178 = vld [vmem:[%s3 + $0x20] sm:$0xff]
  %v179 = vld [vmem:[%s3 + $0x28] sm:$0xff]
  %v180 = vld [vmem:[%s3 + $0x30] sm:$0xff]
  %v181 = vld [vmem:[%s3 + $0x38] sm:$0xff]
  %v182 = vld [vmem:[%s1] sm:$0xff]
  %v183 = vld [vmem:[%s1 + $0x8] sm:$0xff]
  %v184 = vld [vmem:[%s1 + $0x10] sm:$0xff]
  %v185 = vld [vmem:[%s1 + $0x18] sm:$0xff]
  %187 = vset.pattern.permute.xlu0 0
  %188 = vperm.xlu0 %187, %v174
  %v189 = vpop.permute.xlu0 %188
  %192 = vset.pattern.permute.xlu0 0
  %193 = vperm.xlu0 %192, %v175
  %v194 = vpop.permute.xlu0 %193
  %197 = vset.pattern.permute.xlu0 0
  %198 = vperm.xlu0 %197, %v176
  %v199 = vpop.permute.xlu0 %198
  %202 = vset.pattern.permute.xlu0 0
  %203 = vperm.xlu0 %202, %v177
  %v204 = vpop.permute.xlu0 %203
  %vm206 = vcmask 457728
  %v208 = vsel %vm206, %v182, 0
  %v211 = vsel %vm206, %v183, 0
  %v214 = vsel %vm206, %v184, 0
  %v217 = vsel %vm206, %v185, 0
  %219 = vmatpush.msra.mxu0 0.0
  %220 = vmatpush.msra.mxu0 0.0
  %221 = vmatpush.msra.mxu0 0.0
  %222 = vmatpush.msra.mxu0 0.0
  %223 = vmatpush.msra.mxu0 0.0
  %224 = vmatpush.msra.mxu0 0.0
  %225 = vmatpush.msra.mxu0 0.0
  %226 = vmatpush.msra.mxu0 0.0
  %227 = vmatpush.msra.mxu0 0.0
  %228 = vmatpush.msra.mxu0 %v172
  %229 = vmatpush.msra.mxu0 %v170
  %230 = vmatpush.msra.mxu0 %v168
  %231 = vmatpush.msra.mxu0 %v166
  %232 = vmatpush.msra.mxu0 %v164
  %233 = vmatpush.msra.mxu0 %v162
  %234 = vmatpush.msra.mxu0 %v160
  %235 = vmatmul.f32.gmra.mxu0 %v208
  %v236 = vpop.f32.mrf.mxu0
  %v237 = vadd.f32 %v189, %v236
  %238 = vmatmul.f32.gmra.mxu0 %v211
  %v239 = vpop.f32.mrf.mxu0
  %v240 = vadd.f32 %v194, %v239
  %241 = vmatmul.f32.gmra.mxu0 %v214
  %v242 = vpop.f32.mrf.mxu0
  %v243 = vadd.f32 %v199, %v242
  %244 = vmatmul.f32.gmra.mxu0 %v217
  %v245 = vpop.f32.mrf.mxu0
  %v246 = vadd.f32 %v204, %v245
  %247 = vdwg.mxu0
  %248 = vmatpush.msra.mxu0 0.0
  %249 = vmatpush.msra.mxu0 0.0
  %250 = vmatpush.msra.mxu0 0.0
  %251 = vmatpush.msra.mxu0 0.0
  %252 = vmatpush.msra.mxu0 0.0
  %253 = vmatpush.msra.mxu0 0.0
  %254 = vmatpush.msra.mxu0 0.0
  %255 = vmatpush.msra.mxu0 0.0
  %256 = vmatpush.msra.mxu0 0.0
  %257 = vmatpush.msra.mxu0 %v173
  %258 = vmatpush.msra.mxu0 %v171
  %259 = vmatpush.msra.mxu0 %v169
  %260 = vmatpush.msra.mxu0 %v167
  %261 = vmatpush.msra.mxu0 %v165
  %262 = vmatpush.msra.mxu0 %v163
  %263 = vmatpush.msra.mxu0 %v161
  %264 = vmatmul.f32.gmra.mxu0 %v208
  %v265 = vpop.f32.mrf.mxu0
  %v266 = vadd.f32 %v189, %v265
  %267 = vmatmul.f32.gmra.mxu0 %v211
  %v268 = vpop.f32.mrf.mxu0
  %v269 = vadd.f32 %v194, %v268
  %270 = vmatmul.f32.gmra.mxu0 %v214
  %v271 = vpop.f32.mrf.mxu0
  %v272 = vadd.f32 %v199, %v271
  %273 = vmatmul.f32.gmra.mxu0 %v217
  %v274 = vpop.f32.mrf.mxu0
  %v275 = vadd.f32 %v204, %v274
  %276 = vdwg.mxu0
  %v277 = vmax.f32 %v237, 0.0
  %v278 = vmax.f32 %v266, 0.0
  %v279 = vmax.f32 %v240, 0.0
  %v280 = vmax.f32 %v269, 0.0
  %v281 = vmax.f32 %v243, 0.0
  %v282 = vmax.f32 %v272, 0.0
  %v283 = vmax.f32 %v246, 0.0
  %v284 = vmax.f32 %v275, 0.0
  %v285 = vld [vmem:[%s2] sm:$0xff]
  %v286 = vld [vmem:[%s2 + $0x8] sm:$0xff]
  %v287 = vld [vmem:[%s2 + $0x10] sm:$0xff]
  %v288 = vld [vmem:[%s2 + $0x18] sm:$0xff]
  %290 = vset.pattern.permute.xlu0 0
  %291 = vperm.xlu0 %290, %v178
  %v292 = vpop.permute.xlu0 %291
  %295 = vset.pattern.permute.xlu0 0
  %296 = vperm.xlu0 %295, %v179
  %v297 = vpop.permute.xlu0 %296
  %300 = vset.pattern.permute.xlu0 0
  %301 = vperm.xlu0 %300, %v180
  %v302 = vpop.permute.xlu0 %301
  %305 = vset.pattern.permute.xlu0 0
  %306 = vperm.xlu0 %305, %v181
  %v307 = vpop.permute.xlu0 %306
  %vm309 = vcmask 261120
  %v311 = vsel %vm309, %v285, 0
  %v314 = vsel %vm309, %v286, 0
  %v317 = vsel %vm309, %v287, 0
  %v320 = vsel %vm309, %v288, 0
  %322 = vmatpush.msra.mxu0 0.0
  %323 = vmatpush.msra.mxu0 0.0
  %324 = vmatpush.msra.mxu0 0.0
  %325 = vmatpush.msra.mxu0 0.0
  %326 = vmatpush.msra.mxu0 0.0
  %327 = vmatpush.msra.mxu0 0.0
  %328 = vmatpush.msra.mxu0 0.0
  %329 = vmatpush.msra.mxu0 0.0
  %330 = vmatpush.msra.mxu0 0.0
  %331 = vmatpush.msra.mxu0 0.0
  %332 = vmatpush.msra.mxu0 0.0
  %333 = vmatpush.msra.mxu0 0.0
  %334 = vmatpush.msra.mxu0 %v283
  %335 = vmatpush.msra.mxu0 %v281
  %336 = vmatpush.msra.mxu0 %v279
  %337 = vmatpush.msra.mxu0 %v277
  %338 = vmatmul.f32.gmra.mxu0 %v311
  %v339 = vpop.f32.mrf.mxu0
  %v340 = vadd.f32 %v292, %v339
  %341 = vmatmul.f32.gmra.mxu0 %v314
  %v342 = vpop.f32.mrf.mxu0
  %v343 = vadd.f32 %v297, %v342
  %344 = vmatmul.f32.gmra.mxu0 %v317
  %v345 = vpop.f32.mrf.mxu0
  %v346 = vadd.f32 %v302, %v345
  %347 = vmatmul.f32.gmra.mxu0 %v320
  %v348 = vpop.f32.mrf.mxu0
  %v349 = vadd.f32 %v307, %v348
  %350 = vdwg.mxu0
  %351 = vmatpush.msra.mxu0 0.0
  %352 = vmatpush.msra.mxu0 0.0
  %353 = vmatpush.msra.mxu0 0.0
  %354 = vmatpush.msra.mxu0 0.0
  %355 = vmatpush.msra.mxu0 0.0
  %356 = vmatpush.msra.mxu0 0.0
  %357 = vmatpush.msra.mxu0 0.0
  %358 = vmatpush.msra.mxu0 0.0
  %359 = vmatpush.msra.mxu0 0.0
  %360 = vmatpush.msra.mxu0 0.0
  %361 = vmatpush.msra.mxu0 0.0
  %362 = vmatpush.msra.mxu0 0.0
  %363 = vmatpush.msra.mxu0 %v284
  %364 = vmatpush.msra.mxu0 %v282
  %365 = vmatpush.msra.mxu0 %v280
  %366 = vmatpush.msra.mxu0 %v278
  %367 = vmatmul.f32.gmra.mxu0 %v311
  %v368 = vpop.f32.mrf.mxu0
  %v369 = vadd.f32 %v292, %v368
  %370 = vmatmul.f32.gmra.mxu0 %v314
  %v371 = vpop.f32.mrf.mxu0
  %v372 = vadd.f32 %v297, %v371
  %373 = vmatmul.f32.gmra.mxu0 %v317
  %v374 = vpop.f32.mrf.mxu0
  %v375 = vadd.f32 %v302, %v374
  %376 = vmatmul.f32.gmra.mxu0 %v320
  %v377 = vpop.f32.mrf.mxu0
  %v378 = vadd.f32 %v307, %v377
  %379 = vdwg.mxu0
  %v380 = vmax.f32 %v340, 0.0
  %v381 = vmax.f32 %v369, 0.0
  %v382 = vmax.f32 %v343, 0.0
  %v383 = vmax.f32 %v372, 0.0
  %v384 = vmax.f32 %v346, 0.0
  %v385 = vmax.f32 %v375, 0.0
  %v386 = vmax.f32 %v349, 0.0
  %v387 = vmax.f32 %v378, 0.0
  %v388 = vld [vmem:[%s4] sm:$0xff]
  %v389 = vld [vmem:[%s4 + $0x8] sm:$0xff]
  %v390 = vld [vmem:[%s4 + $0x10] sm:$0xff]
  %v391 = vld [vmem:[%s4 + $0x18] sm:$0xff]
  %v392 = vld [vmem:[%s5] sm:$0x1]
  %v394 = vperm.slane %v392, 0
  %396 = vxpose.xlu0.b32.start [1/16] %v380, 128
  %397 = vxpose.xlu0.b32.cont [2/16] %v382, 128
  %398 = vxpose.xlu0.b32.cont [3/16] %v384, 128
  %399 = vxpose.xlu0.b32.cont [4/16] %v386, 128
  %400 = vxpose.xlu0.b32.cont [5/16] 0.0, 128
  %401 = vxpose.xlu0.b32.cont [6/16] 0.0, 128
  %402 = vxpose.xlu0.b32.cont [7/16] 0.0, 128
  %403 = vxpose.xlu0.b32.cont [8/16] 0.0, 128
  %404 = vxpose.xlu0.b32.cont [9/16] 0.0, 128
  %405 = vxpose.xlu0.b32.cont [10/16] 0.0, 128
  %406 = vxpose.xlu0.b32.cont [11/16] 0.0, 128
  %407 = vxpose.xlu0.b32.cont [12/16] 0.0, 128
  %408 = vxpose.xlu0.b32.cont [13/16] 0.0, 128
  %409 = vxpose.xlu0.b32.cont [14/16] 0.0, 128
  %410 = vxpose.xlu0.b32.cont [15/16] 0.0, 128
  %411 = vxpose.xlu0.b32.end [16/16] 0.0, 128
  %v412 = vpop.trf.xlu0
  %v413 = vpop.trf.xlu0
  %v414 = vpop.trf.xlu0
  %v415 = vpop.trf.xlu0
  %v416 = vpop.trf.xlu0
  %v417 = vpop.trf.xlu0
  %v418 = vpop.trf.xlu0
  %v419 = vpop.trf.xlu0
  %v420 = vpop.trf.xlu0
  %v421 = vpop.trf.xlu0
  %v422 = vpop.trf.xlu0
  %v423 = vpop.trf.xlu0
  %v424 = vpop.trf.xlu0
  %v425 = vpop.trf.xlu0
  %v426 = vpop.trf.xlu0
  %v427 = vpop.trf.xlu0
  %428 = vxpose.xlu0.b32.start [1/16] %v381, 128
  %429 = vxpose.xlu0.b32.cont [2/16] %v383, 128
  %430 = vxpose.xlu0.b32.cont [3/16] %v385, 128
  %431 = vxpose.xlu0.b32.cont [4/16] %v387, 128
  %432 = vxpose.xlu0.b32.cont [5/16] 0.0, 128
  %433 = vxpose.xlu0.b32.cont [6/16] 0.0, 128
  %434 = vxpose.xlu0.b32.cont [7/16] 0.0, 128
  %435 = vxpose.xlu0.b32.cont [8/16] 0.0, 128
  %436 = vxpose.xlu0.b32.cont [9/16] 0.0, 128
  %437 = vxpose.xlu0.b32.cont [10/16] 0.0, 128
  %438 = vxpose.xlu0.b32.cont [11/16] 0.0, 128
  %439 = vxpose.xlu0.b32.cont [12/16] 0.0, 128
  %440 = vxpose.xlu0.b32.cont [13/16] 0.0, 128
  %441 = vxpose.xlu0.b32.cont [14/16] 0.0, 128
  %442 = vxpose.xlu0.b32.cont [15/16] 0.0, 128
  %443 = vxpose.xlu0.b32.end [16/16] 0.0, 128
  %v444 = vpop.trf.xlu0
  %v445 = vpop.trf.xlu0
  %v446 = vpop.trf.xlu0
  %v447 = vpop.trf.xlu0
  %v448 = vpop.trf.xlu0
  %v449 = vpop.trf.xlu0
  %v450 = vpop.trf.xlu0
  %v451 = vpop.trf.xlu0
  %v452 = vpop.trf.xlu0
  %v453 = vpop.trf.xlu0
  %v454 = vpop.trf.xlu0
  %v455 = vpop.trf.xlu0
  %v456 = vpop.trf.xlu0
  %v457 = vpop.trf.xlu0
  %v458 = vpop.trf.xlu0
  %v459 = vpop.trf.xlu0
  %v461 = vsel %vm309, %v412, 0
  %v464 = vsel %vm309, %v413, 0
  %v467 = vsel %vm309, %v414, 0
  %v470 = vsel %vm309, %v415, 0
  %v473 = vsel %vm309, %v416, 0
  %v476 = vsel %vm309, %v417, 0
  %v479 = vsel %vm309, %v418, 0
  %v482 = vsel %vm309, %v419, 0
  %v485 = vsel %vm309, %v420, 0
  %v488 = vsel %vm309, %v421, 0
  %v491 = vsel %vm309, %v422, 0
  %v494 = vsel %vm309, %v423, 0
  %v497 = vsel %vm309, %v424, 0
  %v500 = vsel %vm309, %v425, 0
  %v503 = vsel %vm309, %v426, 0
  %v506 = vsel %vm309, %v427, 0
  %v509 = vsel %vm309, %v444, 0
  %v512 = vsel %vm309, %v445, 0
  %v515 = vsel %vm309, %v446, 0
  %v518 = vsel %vm309, %v447, 0
  %v521 = vsel %vm309, %v448, 0
  %v524 = vsel %vm309, %v449, 0
  %v527 = vsel %vm309, %v450, 0
  %v530 = vsel %vm309, %v451, 0
  %v533 = vsel %vm309, %v452, 0
  %v536 = vsel %vm309, %v453, 0
  %v539 = vsel %vm309, %v454, 0
  %v542 = vsel %vm309, %v455, 0
  %v545 = vsel %vm309, %v456, 0
  %v548 = vsel %vm309, %v457, 0
  %v551 = vsel %vm309, %v458, 0
  %v554 = vsel %vm309, %v459, 0
  %556 = vmatpush.msra.mxu0 0.0
  %557 = vmatpush.msra.mxu0 0.0
  %558 = vmatpush.msra.mxu0 0.0
  %559 = vmatpush.msra.mxu0 0.0
  %560 = vmatpush.msra.mxu0 0.0
  %561 = vmatpush.msra.mxu0 0.0
  %562 = vmatpush.msra.mxu0 0.0
  %563 = vmatpush.msra.mxu0 0.0
  %564 = vmatpush.msra.mxu0 0.0
  %565 = vmatpush.msra.mxu0 0.0
  %566 = vmatpush.msra.mxu0 0.0
  %567 = vmatpush.msra.mxu0 0.0
  %568 = vmatpush.msra.mxu0 %v391
  %569 = vmatpush.msra.mxu0 %v390
  %570 = vmatpush.msra.mxu0 %v389
  %571 = vmatpush.msra.mxu0 %v388
  %572 = vmatmul.f32.gmra.mxu0 %v461
  %v573 = vpop.f32.mrf.mxu0
  %v574 = vadd.f32 %v394, %v573
  %575 = vmatmul.f32.gmra.mxu0 %v464
  %v576 = vpop.f32.mrf.mxu0
  %v577 = vadd.f32 %v394, %v576
  %578 = vmatmul.f32.gmra.mxu0 %v467
  %v579 = vpop.f32.mrf.mxu0
  %v580 = vadd.f32 %v394, %v579
  %581 = vmatmul.f32.gmra.mxu0 %v470
  %v582 = vpop.f32.mrf.mxu0
  %v583 = vadd.f32 %v394, %v582
  %584 = vmatmul.f32.gmra.mxu0 %v473
  %v585 = vpop.f32.mrf.mxu0
  %v586 = vadd.f32 %v394, %v585
  %587 = vmatmul.f32.gmra.mxu0 %v476
  %v588 = vpop.f32.mrf.mxu0
  %v589 = vadd.f32 %v394, %v588
  %590 = vmatmul.f32.gmra.mxu0 %v479
  %v591 = vpop.f32.mrf.mxu0
  %v592 = vadd.f32 %v394, %v591
  %593 = vmatmul.f32.gmra.mxu0 %v482
  %v594 = vpop.f32.mrf.mxu0
  %v595 = vadd.f32 %v394, %v594
  %596 = vmatmul.f32.gmra.mxu0 %v485
  %v597 = vpop.f32.mrf.mxu0
  %v598 = vadd.f32 %v394, %v597
  %599 = vmatmul.f32.gmra.mxu0 %v488
  %v600 = vpop.f32.mrf.mxu0
  %v601 = vadd.f32 %v394, %v600
  %602 = vmatmul.f32.gmra.mxu0 %v491
  %v603 = vpop.f32.mrf.mxu0
  %v604 = vadd.f32 %v394, %v603
  %605 = vmatmul.f32.gmra.mxu0 %v494
  %v606 = vpop.f32.mrf.mxu0
  %v607 = vadd.f32 %v394, %v606
  %608 = vmatmul.f32.gmra.mxu0 %v497
  %v609 = vpop.f32.mrf.mxu0
  %v610 = vadd.f32 %v394, %v609
  %611 = vmatmul.f32.gmra.mxu0 %v500
  %v612 = vpop.f32.mrf.mxu0
  %v613 = vadd.f32 %v394, %v612
  %614 = vmatmul.f32.gmra.mxu0 %v503
  %v615 = vpop.f32.mrf.mxu0
  %v616 = vadd.f32 %v394, %v615
  %617 = vmatmul.f32.gmra.mxu0 %v506
  %v618 = vpop.f32.mrf.mxu0
  %v619 = vadd.f32 %v394, %v618
  %620 = vmatmul.f32.gmra.mxu0 %v509
  %v621 = vpop.f32.mrf.mxu0
  %v622 = vadd.f32 %v394, %v621
  %623 = vmatmul.f32.gmra.mxu0 %v512
  %v624 = vpop.f32.mrf.mxu0
  %v625 = vadd.f32 %v394, %v624
  %626 = vmatmul.f32.gmra.mxu0 %v515
  %v627 = vpop.f32.mrf.mxu0
  %v628 = vadd.f32 %v394, %v627
  %629 = vmatmul.f32.gmra.mxu0 %v518
  %v630 = vpop.f32.mrf.mxu0
  %v631 = vadd.f32 %v394, %v630
  %632 = vmatmul.f32.gmra.mxu0 %v521
  %v633 = vpop.f32.mrf.mxu0
  %v634 = vadd.f32 %v394, %v633
  %635 = vmatmul.f32.gmra.mxu0 %v524
  %v636 = vpop.f32.mrf.mxu0
  %v637 = vadd.f32 %v394, %v636
  %638 = vmatmul.f32.gmra.mxu0 %v527
  %v639 = vpop.f32.mrf.mxu0
  %v640 = vadd.f32 %v394, %v639
  %641 = vmatmul.f32.gmra.mxu0 %v530
  %v642 = vpop.f32.mrf.mxu0
  %v643 = vadd.f32 %v394, %v642
  %644 = vmatmul.f32.gmra.mxu0 %v533
  %v645 = vpop.f32.mrf.mxu0
  %v646 = vadd.f32 %v394, %v645
  %647 = vmatmul.f32.gmra.mxu0 %v536
  %v648 = vpop.f32.mrf.mxu0
  %v649 = vadd.f32 %v394, %v648
  %650 = vmatmul.f32.gmra.mxu0 %v539
  %v651 = vpop.f32.mrf.mxu0
  %v652 = vadd.f32 %v394, %v651
  %653 = vmatmul.f32.gmra.mxu0 %v542
  %v654 = vpop.f32.mrf.mxu0
  %v655 = vadd.f32 %v394, %v654
  %656 = vmatmul.f32.gmra.mxu0 %v545
  %v657 = vpop.f32.mrf.mxu0
  %v658 = vadd.f32 %v394, %v657
  %659 = vmatmul.f32.gmra.mxu0 %v548
  %v660 = vpop.f32.mrf.mxu0
  %v661 = vadd.f32 %v394, %v660
  %662 = vmatmul.f32.gmra.mxu0 %v551
  %v663 = vpop.f32.mrf.mxu0
  %v664 = vadd.f32 %v394, %v663
  %665 = vmatmul.f32.gmra.mxu0 %v554
  %v666 = vpop.f32.mrf.mxu0
  %v667 = vadd.f32 %v394, %v666
  %668 = vdwg.mxu0
  %vm669 = vcmask 130048
  %670 = vst.msk [vmem:[%s6] sm:$0xff] %vm669, %v574
  %671 = vst.msk [vmem:[%s6 + $0x8] sm:$0xff] %vm669, %v577
  %672 = vst.msk [vmem:[%s6 + $0x10] sm:$0xff] %vm669, %v580
  %673 = vst.msk [vmem:[%s6 + $0x18] sm:$0xff] %vm669, %v583
  %674 = vst.msk [vmem:[%s6 + $0x20] sm:$0xff] %vm669, %v586
  %675 = vst.msk [vmem:[%s6 + $0x28] sm:$0xff] %vm669, %v589
  %676 = vst.msk [vmem:[%s6 + $0x30] sm:$0xff] %vm669, %v592
  %677 = vst.msk [vmem:[%s6 + $0x38] sm:$0xff] %vm669, %v595
  %678 = vst.msk [vmem:[%s6 + $0x40] sm:$0xff] %vm669, %v598
  %679 = vst.msk [vmem:[%s6 + $0x48] sm:$0xff] %vm669, %v601
  %680 = vst.msk [vmem:[%s6 + $0x50] sm:$0xff] %vm669, %v604
  %681 = vst.msk [vmem:[%s6 + $0x58] sm:$0xff] %vm669, %v607
  %682 = vst.msk [vmem:[%s6 + $0x60] sm:$0xff] %vm669, %v610
  %683 = vst.msk [vmem:[%s6 + $0x68] sm:$0xff] %vm669, %v613
  %684 = vst.msk [vmem:[%s6 + $0x70] sm:$0xff] %vm669, %v616
  %685 = vst.msk [vmem:[%s6 + $0x78] sm:$0xff] %vm669, %v619
  %686 = vst.msk [vmem:[%s6 + $0x80] sm:$0xff] %vm669, %v622
  %687 = vst.msk [vmem:[%s6 + $0x88] sm:$0xff] %vm669, %v625
  %688 = vst.msk [vmem:[%s6 + $0x90] sm:$0xff] %vm669, %v628
  %689 = vst.msk [vmem:[%s6 + $0x98] sm:$0xff] %vm669, %v631
  %690 = vst.msk [vmem:[%s6 + $0xa0] sm:$0xff] %vm669, %v634
  %691 = vst.msk [vmem:[%s6 + $0xa8] sm:$0xff] %vm669, %v637
  %692 = vst.msk [vmem:[%s6 + $0xb0] sm:$0xff] %vm669, %v640
  %693 = vst.msk [vmem:[%s6 + $0xb8] sm:$0xff] %vm669, %v643
  %694 = vst.msk [vmem:[%s6 + $0xc0] sm:$0xff] %vm669, %v646
  %695 = vst.msk [vmem:[%s6 + $0xc8] sm:$0xff] %vm669, %v649
  %696 = vst.msk [vmem:[%s6 + $0xd0] sm:$0xff] %vm669, %v652
  %697 = vst.msk [vmem:[%s6 + $0xd8] sm:$0xff] %vm669, %v655
  %698 = vst.msk [vmem:[%s6 + $0xe0] sm:$0xff] %vm669, %v658
  %699 = vst.msk [vmem:[%s6 + $0xe8] sm:$0xff] %vm669, %v661
  %700 = vst.msk [vmem:[%s6 + $0xf0] sm:$0xff] %vm669, %v664
  %701 = vst.msk [vmem:[%s6 + $0xf8] sm:$0xff] %vm669, %v667
  // Predicated region
  $region26: #{categorical_mlp_forward.1} parent=0 // pred_check
    _
  $region27: #{categorical_mlp_forward.1} parent=0 // pred_check_branch
    %703 = sbr.rel (0) target = $region29
  $region28: #{categorical_mlp_forward.1} parent=0 // pred_region
    _
  $region29: #{categorical_mlp_forward.1} parent=0 // pred_fallthru
    _
  // Predicated region
  $region30: #{categorical_mlp_forward.1} parent=0 // pred_check
    _
  $region31: #{categorical_mlp_forward.1} parent=0 // pred_check_branch
    %705 = sbr.rel (0) target = $region33
  $region32: #{categorical_mlp_forward.1} parent=0 // pred_region
    _
  $region33: #{categorical_mlp_forward.1} parent=0 // pred_fallthru
    _

</llo_original>
